<compile_context>
chip_gen: v6e
topology: v6e:2x2x1
jax: 0.10.0
libtpu: 0.0.40
codegen_flags: <defaults>
</compile_context>

<pallas_src>
import functools

import jax
import jax.numpy as jnp
from jax.experimental import pallas as pl
from jax.experimental.pallas import tpu as pltpu


def _mhsa_kernel(x_ref, wqkv_ref, bqkv_ref, wp_ref, bp_ref, o_ref,
                 qkv_scr, ho_scr, *, num_heads, head_dim, batch_block):
    """One grid step = one batch block.  Weights are resident in VMEM."""
    in_dt = x_ref.dtype
    E = num_heads * head_dim

    wqkv = wqkv_ref[...]        # (E, 3E)  resident across grid steps
    bqkv = bqkv_ref[...]        # (1, 3E)  (scale already folded into Q part)
    wp = wp_ref[...]            # (E, E)
    bp = bp_ref[...]            # (1, E)

    for bi in range(batch_block):                       # static, unrolled
        x = x_ref[bi]                                   # (N, E), native dtype
        # Full-width QKV projection for ALL heads: (N,E)@(E,3E), f32 accum.
        qkv_scr[...] = (jnp.dot(x, wqkv, preferred_element_type=jnp.float32)
                        + bqkv).astype(in_dt)

        # Per-head attention (static in-kernel loop, no per-head grid steps).
        for h in range(num_heads):                      # static, unrolled
            lo = h * head_dim
            q = qkv_scr[:, lo:lo + head_dim]            # (N, hd)
            k = qkv_scr[:, E + lo:E + lo + head_dim]    # (N, hd)
            v = qkv_scr[:, 2 * E + lo:2 * E + lo + head_dim]

            # Scores: contract the head dim directly (no materialized k.T).
            s = jax.lax.dot_general(q, k, (((1,), (1,)), ((), ())),
                                    preferred_element_type=jnp.float32)  # (N,N)

            # Softmax in f32; keep UNNORMALIZED here, normalize after P@V.
            m = jnp.max(s, axis=-1, keepdims=True)
            p = jnp.exp(s - m)                           # (N, N) f32
            l = jnp.sum(p, axis=-1, keepdims=True)       # (N, 1) f32

            o = jnp.dot(p.astype(in_dt), v,
                        preferred_element_type=jnp.float32)  # (N, hd) f32
            o = o * pl.reciprocal(l, approx=True)            # EUP, ~free slot

            # Lane-concatenate this head's output into the (N, E) scratch.
            ho_scr[:, lo:lo + head_dim] = o.astype(in_dt)

        # One full-width output projection for ALL heads: (N,E)@(E,E).
        o_ref[bi] = (jnp.dot(ho_scr[...], wp, preferred_element_type=jnp.float32)
                     + bp).astype(o_ref.dtype)


def multi_head_self_attention(x, w_qkv, b_qkv, w_proj, b_proj, *, num_heads,
                              batch_block=1):
    """x: [B, N, E]; w_qkv: [E, 3E]; b_qkv: [1, 3E]; w_proj: [E, E]; b_proj: [1, E].
    (Use prepare_weights to convert PyTorch-layout parameters.)"""
    B, N, E = x.shape
    assert E % num_heads == 0, "embed_dim must be divisible by num_heads"
    assert B % batch_block == 0, "batch must be divisible by batch_block"
    hd = E // num_heads
    bb = batch_block

    kernel = functools.partial(_mhsa_kernel, num_heads=num_heads,
                               head_dim=hd, batch_block=bb)

    # Explicit VMEM budget (v7x has only 64 MiB / 32 MiB scoped default):
    # resident weights + double-buffered x/out blocks + QKV / head-out scratch
    # + (N,N) f32 score headroom.  Clamp to [32 MiB, 48 MiB].
    itemsize = jnp.dtype(x.dtype).itemsize
    weight_bytes = (E * 3 * E + 3 * E + E * E + E) * itemsize
    buf_bytes = 4 * bb * N * E * itemsize + 4 * N * E * itemsize + N * N * 4
    vmem_limit = int(min(max(2 * (weight_bytes + buf_bytes), 32 * 2 ** 20),
                         48 * 2 ** 20))

    return pl.pallas_call(
        kernel,
        out_shape=jax.ShapeDtypeStruct((B, N, E), x.dtype),
        grid_spec=pltpu.PrefetchScalarGridSpec(
            num_scalar_prefetch=0,
            grid=(B // bb,),
            in_specs=[
                pl.BlockSpec((bb, N, E), lambda b: (b, 0, 0)),   # x (batch block)
                pl.BlockSpec((E, 3 * E), lambda b: (0, 0)),      # W_qkv (resident)
                pl.BlockSpec((1, 3 * E), lambda b: (0, 0)),      # b_qkv (resident)
                pl.BlockSpec((E, E), lambda b: (0, 0)),          # W_proj (resident)
                pl.BlockSpec((1, E), lambda b: (0, 0)),          # b_proj (resident)
            ],
            out_specs=pl.BlockSpec((bb, N, E), lambda b: (b, 0, 0)),
            scratch_shapes=[
                pltpu.VMEM((N, 3 * E), x.dtype),   # QKV for all heads
                pltpu.VMEM((N, E), x.dtype),       # lane-concatenated head outputs
            ],
        ),
        compiler_params=pltpu.CompilerParams(
            dimension_semantics=("parallel",),
            vmem_limit_bytes=vmem_limit),
    )(x, w_qkv, b_qkv, w_proj, b_proj)


def prepare_weights(wqkv, bqkv, wproj, bproj, *, num_heads, compute_dtype=None):
    """Convert PyTorch-layout params to kernel layout (done once, outside the
    kernel).  wqkv: [3E, E], bqkv: [3E], wproj: [E, E], bproj: [E].

    The PyTorch reshape (B,N,3,H,hd) means the 3E output axis is already
    [q|k|v] with heads contiguous inside each block, so no head-major
    re-layout is needed.  The softmax scale is folded into the Q columns.
    """
    E = wproj.shape[0]
    hd = E // num_heads
    scale = hd ** (-0.5)

    w_qkv = wqkv.T                                   # (E, 3E)  [in, out]
    col_scale = jnp.concatenate(
        [jnp.full((E,), scale, dtype=w_qkv.dtype),
         jnp.ones((2 * E,), dtype=w_qkv.dtype)])
    w_qkv = w_qkv * col_scale[None, :]               # fold scale into W_q
    b_qkv = (bqkv * col_scale).reshape(1, 3 * E)     # ... and into b_q

    w_p = wproj.T                                    # (E, E)  [in, out]
    b_p = bproj.reshape(1, E)

    if compute_dtype is not None:
        w_qkv = w_qkv.astype(compute_dtype)
        b_qkv = b_qkv.astype(compute_dtype)
        w_p = w_p.astype(compute_dtype)
        b_p = b_p.astype(compute_dtype)
    return w_qkv, b_qkv, w_p, b_p


def reference_mhsa(x, wqkv, bqkv, wproj, bproj, *, num_heads):
    """Pure-JAX reference mirroring the PyTorch forward exactly."""
    B, N, E = x.shape
    hd = E // num_heads
    scale = hd ** (-0.5)
    qkv = x @ wqkv.T + bqkv                               # (B, N, 3E)
    qkv = qkv.reshape(B, N, 3, num_heads, hd).transpose(2, 0, 3, 1, 4)
    q, k, v = qkv[0], qkv[1], qkv[2]                      # (B, H, N, hd)
    attn = jnp.einsum('bhqd,bhkd->bhqk', q, k) * scale
    attn = jax.nn.softmax(attn, axis=-1)
    out = jnp.einsum('bhqk,bhkd->bhqd', attn, v)          # (B, H, N, hd)
    out = out.transpose(0, 2, 1, 3).reshape(B, N, E)
    return out @ wproj.T + bproj


if __name__ == "__main__":
    B, N, E = 2, 8, 32
    num_heads = 4

    key = jax.random.PRNGKey(0)
    kx, kw1, kb1, kw2, kb2 = jax.random.split(key, 5)

    x = jax.random.normal(kx, (B, N, E), dtype=jnp.float32)

    # nn.Linear(embed_dim, embed_dim*3): weight (3E, E), bias (3E,)
    wqkv = jax.random.normal(kw1, (3 * E, E), dtype=jnp.float32) * 0.05
    bqkv = jax.random.normal(kb1, (3 * E,), dtype=jnp.float32) * 0.05
    # nn.Linear(embed_dim, embed_dim): weight (E, E), bias (E,)
    wproj = jax.random.normal(kw2, (E, E), dtype=jnp.float32) * 0.05
    bproj = jax.random.normal(kb2, (E,), dtype=jnp.float32) * 0.05

    ref = reference_mhsa(x, wqkv, bqkv, wproj, bproj, num_heads=num_heads)

    # f32 path: tight-ish tolerance (approx reciprocal has ~2^-12 rel error).
    params = prepare_weights(wqkv, bqkv, wproj, bproj, num_heads=num_heads)
    out = multi_head_self_attention(x, *params, num_heads=num_heads)
    out = jax.block_until_ready(out)
    assert out.shape == (B, N, E)
    assert jnp.allclose(out, ref, atol=2e-3, rtol=2e-3), "f32 mismatch vs reference"

    # bf16 path: what a production caller should use to hit MXU peak (per review).
    params_bf16 = prepare_weights(wqkv, bqkv, wproj, bproj, num_heads=num_heads,
                                  compute_dtype=jnp.bfloat16)
    out_bf16 = multi_head_self_attention(x.astype(jnp.bfloat16), *params_bf16,
                                         num_heads=num_heads)
    out_bf16 = jax.block_until_ready(out_bf16)
    assert jnp.allclose(out_bf16.astype(jnp.float32), ref, atol=6e-2, rtol=6e-2), \
        "bf16 mismatch vs reference"

    print("KERNEL_OK")
</pallas_src>

<mosaic_0001>
module attributes {stable_mosaic.version = 11 : i64} {
  func.func @_mhsa_kernel(%arg0: i32, %arg1: memref<1x8x32xf32, #tpu.memory_space<vmem>>, %arg2: memref<32x96xf32, #tpu.memory_space<vmem>>, %arg3: memref<1x96xf32, #tpu.memory_space<vmem>>, %arg4: memref<32x32xf32, #tpu.memory_space<vmem>>, %arg5: memref<1x32xf32, #tpu.memory_space<vmem>>, %arg6: memref<1x8x32xf32, #tpu.memory_space<vmem>>, %arg7: memref<8x96xf32, #tpu.memory_space<vmem>>, %arg8: memref<8x32xf32, #tpu.memory_space<vmem>>) attributes {dimension_semantics = [#tpu.dimension_semantics<parallel>], iteration_bounds = array<i64: 2>, scalar_prefetch = 0 : i64, scratch_operands = 2 : i64, tpu.core_type = #tpu.core_type<tc>, window_params = [{transform_indices = @transform_0, window_bounds = array<i64: 1, 8, 32>}, {pipeline_mode = #tpu.pipeline_mode<synchronous>, transform_indices = @transform_1, window_bounds = array<i64: 32, 96>}, {pipeline_mode = #tpu.pipeline_mode<synchronous>, transform_indices = @transform_2, window_bounds = array<i64: 1, 96>}, {pipeline_mode = #tpu.pipeline_mode<synchronous>, transform_indices = @transform_3, window_bounds = array<i64: 32, 32>}, {pipeline_mode = #tpu.pipeline_mode<synchronous>, transform_indices = @transform_4, window_bounds = array<i64: 1, 32>}, {transform_indices = @transform_5, window_bounds = array<i64: 1, 8, 32>}]} {
    %c0 = arith.constant 0 : index
    %c0_0 = arith.constant 0 : index
    %0 = vector.load %arg2[%c0, %c0_0] : memref<32x96xf32, #tpu.memory_space<vmem>>, vector<32x96xf32>
    %c0_1 = arith.constant 0 : index
    %c0_2 = arith.constant 0 : index
    %1 = vector.load %arg3[%c0_1, %c0_2] : memref<1x96xf32, #tpu.memory_space<vmem>>, vector<1x96xf32>
    %c0_3 = arith.constant 0 : index
    %c0_4 = arith.constant 0 : index
    %2 = vector.load %arg4[%c0_3, %c0_4] : memref<32x32xf32, #tpu.memory_space<vmem>>, vector<32x32xf32>
    %c0_5 = arith.constant 0 : index
    %c0_6 = arith.constant 0 : index
    %3 = vector.load %arg5[%c0_5, %c0_6] : memref<1x32xf32, #tpu.memory_space<vmem>>, vector<1x32xf32>
    %c0_7 = arith.constant 0 : index
    %c0_8 = arith.constant 0 : index
    %c0_9 = arith.constant 0 : index
    %4 = vector.load %arg1[%c0_7, %c0_8, %c0_9] : memref<1x8x32xf32, #tpu.memory_space<vmem>>, vector<1x8x32xf32>
    %5 = vector.shape_cast %4 : vector<1x8x32xf32> to vector<8x32xf32>
    %cst = arith.constant dense<0.000000e+00> : vector<8x96xf32>
    %6 = tpu.matmul %5, %0, %cst {dimension_numbers = #tpu.dot_dimension_numbers<[1], [0], [0], [1], [0, 0, 1, 1], [], []>} : vector<8x32xf32>, vector<32x96xf32>, vector<8x96xf32> -> vector<8x96xf32>
    %7 = vector.broadcast %1 : vector<1x96xf32> to vector<8x96xf32>
    %8 = arith.addf %6, %7 : vector<8x96xf32>
    %c0_10 = arith.constant 0 : index
    %c0_11 = arith.constant 0 : index
    %9 = vector.load %arg7[%c0_10, %c0_11] : memref<8x96xf32, #tpu.memory_space<vmem>>, vector<8x96xf32>
    tpu.vector_store %arg7[%c0_10, %c0_11], %8 {strides = array<i32>} : memref<8x96xf32, #tpu.memory_space<vmem>>, vector<8x96xf32>,
    %c0_12 = arith.constant 0 : index
    %c0_13 = arith.constant 0 : index
    %10 = vector.load %arg7[%c0_12, %c0_13] : memref<8x96xf32, #tpu.memory_space<vmem>>, vector<8x8xf32>
    %c0_14 = arith.constant 0 : index
    %c32 = arith.constant 32 : index
    %11 = vector.load %arg7[%c0_14, %c32] : memref<8x96xf32, #tpu.memory_space<vmem>>, vector<8x8xf32>
    %c0_15 = arith.constant 0 : index
    %c64 = arith.constant 64 : index
    %12 = vector.load %arg7[%c0_15, %c64] : memref<8x96xf32, #tpu.memory_space<vmem>>, vector<8x8xf32>
    %cst_16 = arith.constant dense<0.000000e+00> : vector<8x8xf32>
    %13 = tpu.matmul %10, %11, %cst_16 {dimension_numbers = #tpu.dot_dimension_numbers<[1], [1], [0], [0], [0, 0, 1, 0], [], []>} : vector<8x8xf32>, vector<8x8xf32>, vector<8x8xf32> -> vector<8x8xf32>
    %cst_17 = arith.constant dense<0xFF800000> : vector<8xf32>
    %14 = vector.multi_reduction <maximumf>, %13, %cst_17 [1] : vector<8x8xf32> to vector<8xf32>
    %15 = vector.shape_cast %14 : vector<8xf32> to vector<8x1xf32>
    %16 = vector.broadcast %15 : vector<8x1xf32> to vector<8x8xf32>
    %17 = arith.subf %13, %16 : vector<8x8xf32>
    %18 = math.exp %17 : vector<8x8xf32>
    %cst_18 = arith.constant dense<0.000000e+00> : vector<8xf32>
    %19 = vector.multi_reduction <add>, %18, %cst_18 [1] : vector<8x8xf32> to vector<8xf32>
    %20 = vector.shape_cast %19 : vector<8xf32> to vector<8x1xf32>
    %cst_19 = arith.constant dense<0.000000e+00> : vector<8x8xf32>
    %21 = tpu.matmul %18, %12, %cst_19 {dimension_numbers = #tpu.dot_dimension_numbers<[1], [0], [0], [1], [0, 0, 1, 1], [], []>} : vector<8x8xf32>, vector<8x8xf32>, vector<8x8xf32> -> vector<8x8xf32>
    %22 = tpu.reciprocal %20 {approx = true} : vector<8x1xf32> -> vector<8x1xf32>
    %23 = vector.broadcast %22 : vector<8x1xf32> to vector<8x8xf32>
    %24 = arith.mulf %21, %23 : vector<8x8xf32>
    %c0_20 = arith.constant 0 : index
    %c0_21 = arith.constant 0 : index
    %25 = vector.load %arg8[%c0_20, %c0_21] : memref<8x32xf32, #tpu.memory_space<vmem>>, vector<8x8xf32>
    tpu.vector_store %arg8[%c0_20, %c0_21], %24 {strides = array<i32>} : memref<8x32xf32, #tpu.memory_space<vmem>>, vector<8x8xf32>,
    %c0_22 = arith.constant 0 : index
    %c8 = arith.constant 8 : index
    %26 = vector.load %arg7[%c0_22, %c8] : memref<8x96xf32, #tpu.memory_space<vmem>>, vector<8x8xf32>
    %c0_23 = arith.constant 0 : index
    %c40 = arith.constant 40 : index
    %27 = vector.load %arg7[%c0_23, %c40] : memref<8x96xf32, #tpu.memory_space<vmem>>, vector<8x8xf32>
    %c0_24 = arith.constant 0 : index
    %c72 = arith.constant 72 : index
    %28 = vector.load %arg7[%c0_24, %c72] : memref<8x96xf32, #tpu.memory_space<vmem>>, vector<8x8xf32>
    %cst_25 = arith.constant dense<0.000000e+00> : vector<8x8xf32>
    %29 = tpu.matmul %26, %27, %cst_25 {dimension_numbers = #tpu.dot_dimension_numbers<[1], [1], [0], [0], [0, 0, 1, 0], [], []>} : vector<8x8xf32>, vector<8x8xf32>, vector<8x8xf32> -> vector<8x8xf32>
    %cst_26 = arith.constant dense<0xFF800000> : vector<8xf32>
    %30 = vector.multi_reduction <maximumf>, %29, %cst_26 [1] : vector<8x8xf32> to vector<8xf32>
    %31 = vector.shape_cast %30 : vector<8xf32> to vector<8x1xf32>
    %32 = vector.broadcast %31 : vector<8x1xf32> to vector<8x8xf32>
    %33 = arith.subf %29, %32 : vector<8x8xf32>
    %34 = math.exp %33 : vector<8x8xf32>
    %cst_27 = arith.constant dense<0.000000e+00> : vector<8xf32>
    %35 = vector.multi_reduction <add>, %34, %cst_27 [1] : vector<8x8xf32> to vector<8xf32>
    %36 = vector.shape_cast %35 : vector<8xf32> to vector<8x1xf32>
    %cst_28 = arith.constant dense<0.000000e+00> : vector<8x8xf32>
    %37 = tpu.matmul %34, %28, %cst_28 {dimension_numbers = #tpu.dot_dimension_numbers<[1], [0], [0], [1], [0, 0, 1, 1], [], []>} : vector<8x8xf32>, vector<8x8xf32>, vector<8x8xf32> -> vector<8x8xf32>
    %38 = tpu.reciprocal %36 {approx = true} : vector<8x1xf32> -> vector<8x1xf32>
    %39 = vector.broadcast %38 : vector<8x1xf32> to vector<8x8xf32>
    %40 = arith.mulf %37, %39 : vector<8x8xf32>
    %c0_29 = arith.constant 0 : index
    %c8_30 = arith.constant 8 : index
    %41 = vector.load %arg8[%c0_29, %c8_30] : memref<8x32xf32, #tpu.memory_space<vmem>>, vector<8x8xf32>
    tpu.vector_store %arg8[%c0_29, %c8_30], %40 {strides = array<i32>} : memref<8x32xf32, #tpu.memory_space<vmem>>, vector<8x8xf32>,
    %c0_31 = arith.constant 0 : index
    %c16 = arith.constant 16 : index
    %42 = vector.load %arg7[%c0_31, %c16] : memref<8x96xf32, #tpu.memory_space<vmem>>, vector<8x8xf32>
    %c0_32 = arith.constant 0 : index
    %c48 = arith.constant 48 : index
    %43 = vector.load %arg7[%c0_32, %c48] : memref<8x96xf32, #tpu.memory_space<vmem>>, vector<8x8xf32>
    %c0_33 = arith.constant 0 : index
    %c80 = arith.constant 80 : index
    %44 = vector.load %arg7[%c0_33, %c80] : memref<8x96xf32, #tpu.memory_space<vmem>>, vector<8x8xf32>
    %cst_34 = arith.constant dense<0.000000e+00> : vector<8x8xf32>
    %45 = tpu.matmul %42, %43, %cst_34 {dimension_numbers = #tpu.dot_dimension_numbers<[1], [1], [0], [0], [0, 0, 1, 0], [], []>} : vector<8x8xf32>, vector<8x8xf32>, vector<8x8xf32> -> vector<8x8xf32>
    %cst_35 = arith.constant dense<0xFF800000> : vector<8xf32>
    %46 = vector.multi_reduction <maximumf>, %45, %cst_35 [1] : vector<8x8xf32> to vector<8xf32>
    %47 = vector.shape_cast %46 : vector<8xf32> to vector<8x1xf32>
    %48 = vector.broadcast %47 : vector<8x1xf32> to vector<8x8xf32>
    %49 = arith.subf %45, %48 : vector<8x8xf32>
    %50 = math.exp %49 : vector<8x8xf32>
    %cst_36 = arith.constant dense<0.000000e+00> : vector<8xf32>
    %51 = vector.multi_reduction <add>, %50, %cst_36 [1] : vector<8x8xf32> to vector<8xf32>
    %52 = vector.shape_cast %51 : vector<8xf32> to vector<8x1xf32>
    %cst_37 = arith.constant dense<0.000000e+00> : vector<8x8xf32>
    %53 = tpu.matmul %50, %44, %cst_37 {dimension_numbers = #tpu.dot_dimension_numbers<[1], [0], [0], [1], [0, 0, 1, 1], [], []>} : vector<8x8xf32>, vector<8x8xf32>, vector<8x8xf32> -> vector<8x8xf32>
    %54 = tpu.reciprocal %52 {approx = true} : vector<8x1xf32> -> vector<8x1xf32>
    %55 = vector.broadcast %54 : vector<8x1xf32> to vector<8x8xf32>
    %56 = arith.mulf %53, %55 : vector<8x8xf32>
    %c0_38 = arith.constant 0 : index
    %c16_39 = arith.constant 16 : index
    %57 = vector.load %arg8[%c0_38, %c16_39] : memref<8x32xf32, #tpu.memory_space<vmem>>, vector<8x8xf32>
    tpu.vector_store %arg8[%c0_38, %c16_39], %56 {strides = array<i32>} : memref<8x32xf32, #tpu.memory_space<vmem>>, vector<8x8xf32>,
    %c0_40 = arith.constant 0 : index
    %c24 = arith.constant 24 : index
    %58 = vector.load %arg7[%c0_40, %c24] : memref<8x96xf32, #tpu.memory_space<vmem>>, vector<8x8xf32>
    %c0_41 = arith.constant 0 : index
    %c56 = arith.constant 56 : index
    %59 = vector.load %arg7[%c0_41, %c56] : memref<8x96xf32, #tpu.memory_space<vmem>>, vector<8x8xf32>
    %c0_42 = arith.constant 0 : index
    %c88 = arith.constant 88 : index
    %60 = vector.load %arg7[%c0_42, %c88] : memref<8x96xf32, #tpu.memory_space<vmem>>, vector<8x8xf32>
    %cst_43 = arith.constant dense<0.000000e+00> : vector<8x8xf32>
    %61 = tpu.matmul %58, %59, %cst_43 {dimension_numbers = #tpu.dot_dimension_numbers<[1], [1], [0], [0], [0, 0, 1, 0], [], []>} : vector<8x8xf32>, vector<8x8xf32>, vector<8x8xf32> -> vector<8x8xf32>
    %cst_44 = arith.constant dense<0xFF800000> : vector<8xf32>
    %62 = vector.multi_reduction <maximumf>, %61, %cst_44 [1] : vector<8x8xf32> to vector<8xf32>
    %63 = vector.shape_cast %62 : vector<8xf32> to vector<8x1xf32>
    %64 = vector.broadcast %63 : vector<8x1xf32> to vector<8x8xf32>
    %65 = arith.subf %61, %64 : vector<8x8xf32>
    %66 = math.exp %65 : vector<8x8xf32>
    %cst_45 = arith.constant dense<0.000000e+00> : vector<8xf32>
    %67 = vector.multi_reduction <add>, %66, %cst_45 [1] : vector<8x8xf32> to vector<8xf32>
    %68 = vector.shape_cast %67 : vector<8xf32> to vector<8x1xf32>
    %cst_46 = arith.constant dense<0.000000e+00> : vector<8x8xf32>
    %69 = tpu.matmul %66, %60, %cst_46 {dimension_numbers = #tpu.dot_dimension_numbers<[1], [0], [0], [1], [0, 0, 1, 1], [], []>} : vector<8x8xf32>, vector<8x8xf32>, vector<8x8xf32> -> vector<8x8xf32>
    %70 = tpu.reciprocal %68 {approx = true} : vector<8x1xf32> -> vector<8x1xf32>
    %71 = vector.broadcast %70 : vector<8x1xf32> to vector<8x8xf32>
    %72 = arith.mulf %69, %71 : vector<8x8xf32>
    %c0_47 = arith.constant 0 : index
    %c24_48 = arith.constant 24 : index
    %73 = vector.load %arg8[%c0_47, %c24_48] : memref<8x32xf32, #tpu.memory_space<vmem>>, vector<8x8xf32>
    tpu.vector_store %arg8[%c0_47, %c24_48], %72 {strides = array<i32>} : memref<8x32xf32, #tpu.memory_space<vmem>>, vector<8x8xf32>,
    %c0_49 = arith.constant 0 : index
    %c0_50 = arith.constant 0 : index
    %74 = vector.load %arg8[%c0_49, %c0_50] : memref<8x32xf32, #tpu.memory_space<vmem>>, vector<8x32xf32>
    %cst_51 = arith.constant dense<0.000000e+00> : vector<8x32xf32>
    %75 = tpu.matmul %74, %2, %cst_51 {dimension_numbers = #tpu.dot_dimension_numbers<[1], [0], [0], [1], [0, 0, 1, 1], [], []>} : vector<8x32xf32>, vector<32x32xf32>, vector<8x32xf32> -> vector<8x32xf32>
    %76 = vector.broadcast %3 : vector<1x32xf32> to vector<8x32xf32>
    %77 = arith.addf %75, %76 : vector<8x32xf32>
    %c0_52 = arith.constant 0 : index
    %c0_53 = arith.constant 0 : index
    %c0_54 = arith.constant 0 : index
    %78 = vector.load %arg6[%c0_52, %c0_53, %c0_54] : memref<1x8x32xf32, #tpu.memory_space<vmem>>, vector<1x8x32xf32>
    %79 = vector.shape_cast %78 : vector<1x8x32xf32> to vector<8x32xf32>
    %80 = vector.shape_cast %77 : vector<8x32xf32> to vector<1x8x32xf32>
    tpu.vector_store %arg6[%c0_52, %c0_53, %c0_54], %80 {strides = array<i32>} : memref<1x8x32xf32, #tpu.memory_space<vmem>>, vector<1x8x32xf32>,
    return
  }
  func.func @transform_0(%arg0: i32) -> (i32, i32, i32) {
    %c0_i32 = arith.constant 0 : i32
    %c0_i32_0 = arith.constant 0 : i32
    %c0_i32_1 = arith.constant 0 : i32
    return %arg0, %c0_i32, %c0_i32_0 : i32, i32, i32
  }
  func.func @transform_1(%arg0: i32) -> (i32, i32) {
    %c0_i32 = arith.constant 0 : i32
    %c0_i32_0 = arith.constant 0 : i32
    %c0_i32_1 = arith.constant 0 : i32
    return %c0_i32, %c0_i32_0 : i32, i32
  }
  func.func @transform_2(%arg0: i32) -> (i32, i32) {
    %c0_i32 = arith.constant 0 : i32
    %c0_i32_0 = arith.constant 0 : i32
    %c0_i32_1 = arith.constant 0 : i32
    return %c0_i32, %c0_i32_0 : i32, i32
  }
  func.func @transform_3(%arg0: i32) -> (i32, i32) {
    %c0_i32 = arith.constant 0 : i32
    %c0_i32_0 = arith.constant 0 : i32
    %c0_i32_1 = arith.constant 0 : i32
    return %c0_i32, %c0_i32_0 : i32, i32
  }
  func.func @transform_4(%arg0: i32) -> (i32, i32) {
    %c0_i32 = arith.constant 0 : i32
    %c0_i32_0 = arith.constant 0 : i32
    %c0_i32_1 = arith.constant 0 : i32
    return %c0_i32, %c0_i32_0 : i32, i32
  }
  func.func @transform_5(%arg0: i32) -> (i32, i32, i32) {
    %c0_i32 = arith.constant 0 : i32
    %c0_i32_0 = arith.constant 0 : i32
    %c0_i32_1 = arith.constant 0 : i32
    return %arg0, %c0_i32, %c0_i32_0 : i32, i32, i32
  }
}

</mosaic_0001>

<llo_original>
// kernel: tpu_custom_call.1
$region0: #{tpu_custom_call.1}
  #allocation0 [shape = 'u32[]', space=smem, size = 0x4, offset = 0x4, fixed_abs, tag = 'smem constant byte address 0x4 - core index']
  #allocation1 [shape = 'u32[144,128]{1,0:T(1,128)}', space=vmem, size = 0x12000, scoped, tag = 'internal scratch']
  #allocation2 [shape = 'f32[8,96]{1,0:T(8,128)}', space=vmem, size = 0x1000, scoped, tag = 'scratch operand']
  #allocation3 [shape = 'f32[8,32]{1,0:T(8,128)}', space=vmem, size = 0x1000, scoped, tag = 'scratch operand']
  %s0 = inlined_call_operand.hbm [shape: f32[2,8,32], index: 0, kind: input, shape index: {}]
  %s1 = inlined_call_operand.hbm [shape: f32[32,96], index: 1, kind: input, shape index: {}]
  %s2 = inlined_call_operand.vmem [shape: f32[1,96], index: 2, kind: input, shape index: {}]
  %s3 = inlined_call_operand.hbm [shape: f32[32,32], index: 3, kind: input, shape index: {}]
  %s4 = inlined_call_operand.vmem [shape: f32[1,32], index: 4, kind: input, shape index: {}]
  %s5 = inlined_call_operand.hbm [shape: f32[2,8,32], index: 5, kind: output, shape index: {}]
  %s6 = sld [smem:[#allocation0]]
  $region65: #{tpu_custom_call.1} parent=0
    _
  %s8 = ssub.s32 1, %s6
  %s9 = scalar_select 0, %s8, %s6
  $region1: #{tpu_custom_call.1} parent=0
    #allocation4 [shape = 'u8[8192]{0}', space=vmem, size = 0x2000, scoped, tag = 'input window, operand 0']
    #allocation5 [shape = 's32[2]{0}', space=sflag, size = 0x8, scoped, tag = 'scoped memory for tpu_custom_call.1']
    #allocation6 [shape = 's32[2]{0}', space=sflag, size = 0x8, scoped, tag = 'scoped memory for tpu_custom_call.1']
    #allocation7 [shape = 'u8[16384]{0}', space=vmem, size = 0x4000, scoped, tag = 'input window, operand 1, single buffered']
    #allocation8 [shape = 's32[1]{0}', space=sflag, size = 0x4, scoped, tag = 'scoped memory for tpu_custom_call.1']
    #allocation9 [shape = 'u8[16384]{0}', space=vmem, size = 0x4000, scoped, tag = 'input window, operand 3, single buffered']
    #allocation10 [shape = 'u8[8192]{0}', space=vmem, size = 0x2000, scoped, tag = 'output window, operand 0']
    %10 = vsyncpa [#allocation5], 0
    %s11 = scalar_lea.sflag [#allocation5], 1
    %12 = vsyncpa %s11, 0
    %13 = vsyncpa [#allocation8], 0
    %14 = vsyncpa [#allocation6], 0
    %s15 = scalar_lea.sflag [#allocation6], 1
    %16 = vsyncpa %s15, 0
    loop: start=0, step=1, limit=4
    $region2: #{tpu_custom_call.1} parent=1 // loop_pre_header
      _
    $region3: #{tpu_custom_call.1} parent=1 // loop_header
      %s18 = sphi 0, %s22
      %p19 = scmp.ge.s32.totalorder %s18, 4
      %s28 = sphi 0, %s30
      %s31 = sphi 0, %s28
      %s32 = sphi 0, %s31
      %s48 = sphi 0, %s32
      %s52 = sphi 0, %s52
      %s54 = sphi 0, %s52
      %s55 = sphi 0, %s54
      %s69 = sphi 0, %s55
      %s73 = sphi 0, %s73
      %s75 = sphi 0, %s73
      %s76 = sphi 0, %s75
      %s90 = sphi 0, %s76
      %s94 = sphi 0, %s94
      %s96 = sphi 0, %s94
      %s97 = sphi 0, %s96
      %s111 = sphi 0, %s97
      %s115 = sphi 0, %s115
      %s117 = sphi 0, %s115
      %s118 = sphi 0, %s117
      %s132 = sphi 0, %s118
      %s138 = sphi 0, %s140
      %s141 = sphi 0, %s138
      %s142 = sphi 0, %s141
      %s158 = sphi 0, %s142
    $region4: #{tpu_custom_call.1} parent=1 // loop_header_branch
      %21 = sbr.rel (%p19) target = $region8
    $region5: #{tpu_custom_call.1} parent=1 // loop_body
      %s23 = ssub.s32 %s18, 1
      %s24 = ssub.s32 %s18, 2
      %s25 = sadd.s32 %s18, 1
      %s26 = ssub.s32 %s18, %s25
      %p27 = scmp.eq.s32.totalorder %s26, 0
      %s29 = sadd.s32 %s28, 1
      %s30 = scalar_select %p27, %s28, %s29
      %p33 = pneg %p27
      %p34 = scmp.eq.s32.totalorder %s18, 1
      %p35 = por %p33, %p34
      %p36 = scmp.ne.s32.totalorder %s28, %s31
      %p37 = scmp.eq.s32.totalorder %s18, 0
      %p38 = por %p36, %p37
      %p39 = scmp.ne.s32.totalorder %s28, %s31
      %p40 = scmp.eq.s32.totalorder %s23, 1
      %p41 = por %p39, %p40
      %p42 = scmp.ne.s32.totalorder %s31, %s32
      %p43 = scmp.eq.s32.totalorder %s23, 0
      %p44 = por %p42, %p43
      %p45 = scmp.ne.s32.totalorder %s31, %s32
      %p46 = scmp.eq.s32.totalorder %s24, 1
      %p47 = por %p45, %p46
      %p49 = scmp.ne.s32.totalorder %s32, %s48
      %p50 = scmp.eq.s32.totalorder %s24, 0
      %p51 = por %p49, %p50
      %s53 = sadd.s32 %s52, 1
      %p56 = scmp.eq.s32.totalorder %s18, 1
      %p57 = scmp.ne.s32.totalorder %s52, %s54
      %p58 = scmp.eq.s32.totalorder %s18, 0
      %p59 = por %p57, %p58
      %p60 = scmp.ne.s32.totalorder %s52, %s54
      %p61 = scmp.eq.s32.totalorder %s23, 1
      %p62 = por %p60, %p61
      %p63 = scmp.ne.s32.totalorder %s54, %s55
      %p64 = scmp.eq.s32.totalorder %s23, 0
      %p65 = por %p63, %p64
      %p66 = scmp.ne.s32.totalorder %s54, %s55
      %p67 = scmp.eq.s32.totalorder %s24, 1
      %p68 = por %p66, %p67
      %p70 = scmp.ne.s32.totalorder %s55, %s69
      %p71 = scmp.eq.s32.totalorder %s24, 0
      %p72 = por %p70, %p71
      %s74 = sadd.s32 %s73, 1
      %p77 = scmp.eq.s32.totalorder %s18, 1
      %p78 = scmp.ne.s32.totalorder %s73, %s75
      %p79 = scmp.eq.s32.totalorder %s18, 0
      %p80 = por %p78, %p79
      %p81 = scmp.ne.s32.totalorder %s73, %s75
      %p82 = scmp.eq.s32.totalorder %s23, 1
      %p83 = por %p81, %p82
      %p84 = scmp.ne.s32.totalorder %s75, %s76
      %p85 = scmp.eq.s32.totalorder %s23, 0
      %p86 = por %p84, %p85
      %p87 = scmp.ne.s32.totalorder %s75, %s76
      %p88 = scmp.eq.s32.totalorder %s24, 1
      %p89 = por %p87, %p88
      %p91 = scmp.ne.s32.totalorder %s76, %s90
      %p92 = scmp.eq.s32.totalorder %s24, 0
      %p93 = por %p91, %p92
      %s95 = sadd.s32 %s94, 1
      %p98 = scmp.eq.s32.totalorder %s18, 1
      %p99 = scmp.ne.s32.totalorder %s94, %s96
      %p100 = scmp.eq.s32.totalorder %s18, 0
      %p101 = por %p99, %p100
      %p102 = scmp.ne.s32.totalorder %s94, %s96
      %p103 = scmp.eq.s32.totalorder %s23, 1
      %p104 = por %p102, %p103
      %p105 = scmp.ne.s32.totalorder %s96, %s97
      %p106 = scmp.eq.s32.totalorder %s23, 0
      %p107 = por %p105, %p106
      %p108 = scmp.ne.s32.totalorder %s96, %s97
      %p109 = scmp.eq.s32.totalorder %s24, 1
      %p110 = por %p108, %p109
      %p112 = scmp.ne.s32.totalorder %s97, %s111
      %p113 = scmp.eq.s32.totalorder %s24, 0
      %p114 = por %p112, %p113
      %s116 = sadd.s32 %s115, 1
      %p119 = scmp.eq.s32.totalorder %s18, 1
      %p120 = scmp.ne.s32.totalorder %s115, %s117
      %p121 = scmp.eq.s32.totalorder %s18, 0
      %p122 = por %p120, %p121
      %p123 = scmp.ne.s32.totalorder %s115, %s117
      %p124 = scmp.eq.s32.totalorder %s23, 1
      %p125 = por %p123, %p124
      %p126 = scmp.ne.s32.totalorder %s117, %s118
      %p127 = scmp.eq.s32.totalorder %s23, 0
      %p128 = por %p126, %p127
      %p129 = scmp.ne.s32.totalorder %s117, %s118
      %p130 = scmp.eq.s32.totalorder %s24, 1
      %p131 = por %p129, %p130
      %p133 = scmp.ne.s32.totalorder %s118, %s132
      %p134 = scmp.eq.s32.totalorder %s24, 0
      %p135 = por %p133, %p134
      %s136 = ssub.s32 %s18, %s25
      %p137 = scmp.eq.s32.totalorder %s136, 0
      %s139 = sadd.s32 %s138, 1
      %s140 = scalar_select %p137, %s138, %s139
      %p143 = pneg %p137
      %p144 = scmp.eq.s32.totalorder %s18, 1
      %p145 = por %p143, %p144
      %p146 = scmp.ne.s32.totalorder %s138, %s141
      %p147 = scmp.eq.s32.totalorder %s18, 0
      %p148 = por %p146, %p147
      %p149 = scmp.ne.s32.totalorder %s138, %s141
      %p150 = scmp.eq.s32.totalorder %s23, 1
      %p151 = por %p149, %p150
      %p152 = scmp.ne.s32.totalorder %s141, %s142
      %p153 = scmp.eq.s32.totalorder %s23, 0
      %p154 = por %p152, %p153
      %p155 = scmp.ne.s32.totalorder %s141, %s142
      %p156 = scmp.eq.s32.totalorder %s24, 1
      %p157 = por %p155, %p156
      %p159 = scmp.ne.s32.totalorder %s142, %s158
      %p160 = scmp.eq.s32.totalorder %s24, 0
      %p161 = por %p159, %p160
      %p162 = scmp.le.s32.totalorder 1, %s18
      %p163 = scmp.lt.s32.totalorder %s18, 3
      %p164 = pnand %p162, %p163
      %p165 = pneg %p164
      // Predicated region
      $region9: #{tpu_custom_call.1} parent=5 // pred_check
        _
      $region10: #{tpu_custom_call.1} parent=5 // pred_check_branch
        %167 = sbr.rel (%p164) target = $region12
      $region11: #{tpu_custom_call.1} parent=5 // pred_region
        %s168 = ssub.s32 %s18, 1
        // Predicated region
        $region13: #{tpu_custom_call.1} parent=11 // pred_check
          %p169 = pneg %p65
        $region14: #{tpu_custom_call.1} parent=11 // pred_check_branch
          %171 = sbr.rel (%p169) target = $region16
        $region15: #{tpu_custom_call.1} parent=11 // pred_region
          %s173 = ssub.s32 512, 512
          %174 = vsyncadd [#allocation8], %s173
          %s175 = sshll.u32 [#allocation7], 4
          %s176 = int_to_ptr.vmem [resolvable:$true] %s175
          %181 = dma.hbm_to_vmem [thread:$0]  %s1, 512, %s176, [#allocation8], 128, 128, 8
        $region16: #{tpu_custom_call.1} parent=11 // pred_fallthru
          _
        // Predicated region
        $region17: #{tpu_custom_call.1} parent=11 // pred_check
          %p182 = pneg %p86
        $region18: #{tpu_custom_call.1} parent=11 // pred_check_branch
          %184 = sbr.rel (%p182) target = $region20
        $region19: #{tpu_custom_call.1} parent=11 // pred_region
          _
        $region20: #{tpu_custom_call.1} parent=11 // pred_fallthru
          _
        // Predicated region
        $region21: #{tpu_custom_call.1} parent=11 // pred_check
          %p185 = pneg %p107
        $region22: #{tpu_custom_call.1} parent=11 // pred_check_branch
          %187 = sbr.rel (%p185) target = $region24
        $region23: #{tpu_custom_call.1} parent=11 // pred_region
          %s189 = ssub.s32 512, 512
          %190 = vsyncadd [#allocation8], %s189
          %s191 = sshll.u32 [#allocation9], 4
          %s192 = int_to_ptr.vmem [resolvable:$true] %s191
          %197 = dma.hbm_to_vmem [thread:$0]  %s3, 512, %s192, [#allocation8], 128, 128, 8
        $region24: #{tpu_custom_call.1} parent=11 // pred_fallthru
          _
        // Predicated region
        $region25: #{tpu_custom_call.1} parent=11 // pred_check
          %p198 = pneg %p128
        $region26: #{tpu_custom_call.1} parent=11 // pred_check_branch
          %200 = sbr.rel (%p198) target = $region28
        $region27: #{tpu_custom_call.1} parent=11 // pred_region
          _
        $region28: #{tpu_custom_call.1} parent=11 // pred_fallthru
          _
      $region12: #{tpu_custom_call.1} parent=5 // pred_fallthru
        _
      %p201 = scmp.lt.s32.totalorder %s18, 2
      // Predicated region
      $region29: #{tpu_custom_call.1} parent=5 // pred_check
        %p202 = pneg %p201
      $region30: #{tpu_custom_call.1} parent=5 // pred_check_branch
        %204 = sbr.rel (%p202) target = $region32
      $region31: #{tpu_custom_call.1} parent=5 // pred_region
        // Predicated region
        $region33: #{tpu_custom_call.1} parent=31 // pred_check
          %p205 = pneg %p38
        $region34: #{tpu_custom_call.1} parent=31 // pred_check_branch
          %207 = sbr.rel (%p205) target = $region36
        $region35: #{tpu_custom_call.1} parent=31 // pred_region
          %s208 = sand.u32 %s28, 1
          %s209 = scalar_lea.sflag [#allocation5], %s208
          %s210 = sand.u32 %s28, 1
          %s211 = smul.addr %s210, 8
          %s212 = scalar_lea.vmem [#allocation4], %s211
          %s214 = ssub.s32 128, 128
          %215 = vsyncadd %s209, %s214
          %s216 = smul.addr %s18, 128
          %s217 = scalar_lea.hbm %s0, %s216
          %s219 = sshll.u32 %s212, 4
          %s220 = int_to_ptr.vmem [resolvable:$true] %s219
          %222 = dma.hbm_to_vmem [thread:$0]  %s217, 128, %s220, %s209
        $region36: #{tpu_custom_call.1} parent=31 // pred_fallthru
          _
      $region32: #{tpu_custom_call.1} parent=5 // pred_fallthru
        _
      %p223 = scmp.le.s32.totalorder 1, %s18
      %p224 = scmp.lt.s32.totalorder %s18, 3
      %p225 = pnand %p223, %p224
      %p226 = pneg %p225
      // Predicated region
      $region37: #{tpu_custom_call.1} parent=5 // pred_check
        _
      $region38: #{tpu_custom_call.1} parent=5 // pred_check_branch
        %228 = sbr.rel (%p225) target = $region40
      $region39: #{tpu_custom_call.1} parent=5 // pred_region
        %s229 = ssub.s32 %s18, 1
        %s230 = sand.u32 %s31, 1
        %s231 = scalar_lea.sflag [#allocation5], %s230
        %s232 = sand.u32 %s31, 1
        %s233 = smul.addr %s232, 8
        %s234 = scalar_lea.vmem [#allocation4], %s233
        // Predicated region
        $region41: #{tpu_custom_call.1} parent=39 // pred_check
          %p235 = pneg %p44
        $region42: #{tpu_custom_call.1} parent=39 // pred_check_branch
          %237 = sbr.rel (%p235) target = $region44
        $region43: #{tpu_custom_call.1} parent=39 // pred_region
          %238 = dma.done %s231, 128
        $region44: #{tpu_custom_call.1} parent=39 // pred_fallthru
          _
        // Predicated region
        $region45: #{tpu_custom_call.1} parent=39 // pred_check
          %p239 = pneg %p65
        $region46: #{tpu_custom_call.1} parent=39 // pred_check_branch
          %241 = sbr.rel (%p239) target = $region48
        $region47: #{tpu_custom_call.1} parent=39 // pred_region
          %242 = dma.done [#allocation8], 512
        $region48: #{tpu_custom_call.1} parent=39 // pred_fallthru
          _
        // Predicated region
        $region49: #{tpu_custom_call.1} parent=39 // pred_check
          %p243 = pneg %p107
        $region50: #{tpu_custom_call.1} parent=39 // pred_check_branch
          %245 = sbr.rel (%p243) target = $region52
        $region51: #{tpu_custom_call.1} parent=39 // pred_region
          %246 = dma.done [#allocation8], 512
        $region52: #{tpu_custom_call.1} parent=39 // pred_fallthru
          _
        %s247 = sand.u32 %s31, 1
        %s248 = scalar_lea.sflag [#allocation5], %s247
        %s249 = sand.u32 %s31, 1
        %s250 = smul.addr %s249, 8
        %s251 = scalar_lea.vmem [#allocation4], %s250
        %p252 = pneg %p44
        %p253 = pneg %p41
        %p254 = pneg %p65
        %p255 = pneg %p62
        %p256 = pneg %p86
        %p257 = pneg %p83
        %p258 = pneg %p107
        %p259 = pneg %p104
        %p260 = pneg %p128
        %p261 = pneg %p125
        %p262 = pneg %p154
        %p263 = pneg %p151
        %s264 = sand.u32 %s141, 1
        %s265 = scalar_lea.sflag [#allocation6], %s264
        %s266 = sand.u32 %s141, 1
        %s267 = smul.addr %s266, 8
        %s268 = scalar_lea.vmem [#allocation10], %s267
        %v269 = vld [vmem:[#allocation7] sm:$0xff]
        %v270 = vld [vmem:[#allocation7 + $0x8] sm:$0xff]
        %v271 = vld [vmem:[#allocation7 + $0x10] sm:$0xff]
        %v272 = vld [vmem:[#allocation7 + $0x18] sm:$0xff]
        %v273 = vld [vmem:[%s2] sm:$0x1]
        %v274 = vld [vmem:[#allocation9] sm:$0xff]
        %v275 = vld [vmem:[#allocation9 + $0x8] sm:$0xff]
        %v276 = vld [vmem:[#allocation9 + $0x10] sm:$0xff]
        %v277 = vld [vmem:[#allocation9 + $0x18] sm:$0xff]
        %v278 = vld [vmem:[%s4] sm:$0x1]
        %v279 = vld [vmem:[%s234] sm:$0xff]
        %v281 = vlaneseq
        %v282 = vshrl.u32 %v281, 7
        %v283 = vsub.s32 0, %v282
        %v284 = vrot.slane %v273, %v283
        %vm286 = vcmask 261120
        %v288 = vsel %vm286, %v279, 0
        %290 = vmatprep.subr.mxu0 0.0
        %291 = vmatpush1.msra.mxu0 0.0
        %292 = vmatprep.subr.mxu0 0.0
        %293 = vmatpush1.msra.mxu0 0.0
        %294 = vmatprep.subr.mxu0 0.0
        %295 = vmatpush1.msra.mxu0 0.0
        %296 = vmatprep.subr.mxu0 0.0
        %297 = vmatpush1.msra.mxu0 0.0
        %298 = vmatprep.subr.mxu0 0.0
        %299 = vmatpush1.msra.mxu0 0.0
        %300 = vmatprep.subr.mxu0 0.0
        %301 = vmatpush1.msra.mxu0 0.0
        %302 = vmatprep.subr.mxu0 0.0
        %303 = vmatpush1.msra.mxu0 0.0
        %304 = vmatprep.subr.mxu0 0.0
        %305 = vmatpush1.msra.mxu0 0.0
        %306 = vmatprep.subr.mxu0 0.0
        %307 = vmatpush1.msra.mxu0 0.0
        %308 = vmatprep.subr.mxu0 0.0
        %309 = vmatpush1.msra.mxu0 0.0
        %310 = vmatprep.subr.mxu0 0.0
        %311 = vmatpush1.msra.mxu0 0.0
        %312 = vmatprep.subr.mxu0 0.0
        %313 = vmatpush1.msra.mxu0 0.0
        %314 = vmatprep.subr.mxu0 0.0
        %315 = vmatpush1.msra.mxu0 %v272
        %316 = vmatprep.subr.mxu0 0.0
        %317 = vmatpush1.msra.mxu0 %v271
        %318 = vmatprep.subr.mxu0 0.0
        %319 = vmatpush1.msra.mxu0 %v270
        %320 = vmatprep.subr.mxu0 0.0
        %321 = vmatpush1.msra.mxu0 %v269
        %322 = vmatprep.subr.mxu0 0.0
        %323 = vmatpush2.msra.mxu0 0.0
        %324 = vmatprep.subr.mxu0 0.0
        %325 = vmatpush2.msra.mxu0 0.0
        %326 = vmatprep.subr.mxu0 0.0
        %327 = vmatpush2.msra.mxu0 0.0
        %328 = vmatprep.subr.mxu0 0.0
        %329 = vmatpush2.msra.mxu0 0.0
        %330 = vmatprep.subr.mxu0 0.0
        %331 = vmatpush2.msra.mxu0 0.0
        %332 = vmatprep.subr.mxu0 0.0
        %333 = vmatpush2.msra.mxu0 0.0
        %334 = vmatprep.subr.mxu0 0.0
        %335 = vmatpush2.msra.mxu0 0.0
        %336 = vmatprep.subr.mxu0 0.0
        %337 = vmatpush2.msra.mxu0 0.0
        %338 = vmatprep.subr.mxu0 0.0
        %339 = vmatpush2.msra.mxu0 0.0
        %340 = vmatprep.subr.mxu0 0.0
        %341 = vmatpush2.msra.mxu0 0.0
        %342 = vmatprep.subr.mxu0 0.0
        %343 = vmatpush2.msra.mxu0 0.0
        %344 = vmatprep.subr.mxu0 0.0
        %345 = vmatpush2.msra.mxu0 0.0
        %346 = vmatprep.subr.mxu0 0.0
        %347 = vmatpush2.msra.mxu0 0.0
        %348 = vmatprep.subr.mxu0 0.0
        %349 = vmatpush2.msra.mxu0 0.0
        %350 = vmatprep.subr.mxu0 0.0
        %351 = vmatpush2.msra.mxu0 0.0
        %352 = vmatprep.subr.mxu0 0.0
        %353 = vmatpush2.msra.mxu0 0.0
        %354 = vmatprep.mubr.f32.mxu0 0.0
        %355 = vmatmul.mubr.f32.gmra.mxu0 %v288
        %v356 = vpop.f32.mrf.mxu0
        %v357 = vadd.f32 %v284, %v356
        %v358 = vpop.f32.mrf.mxu0
        %359 = vdwg.mxu0
        %vm360 = vcmask 785408
        %361 = vst.msk [vmem:[#allocation2] sm:$0xff] %vm360, %v357
        %v362 = vld [vmem:[#allocation2] sm:$0xff]
        %364 = vrot.lane.b32.xlu0 %v362, 96
        %v365 = vpop.permute.xlu0 %364
        %vm366 = vcmask 64512
        %v367 = vsel %vm366, %v362, 0
        %v369 = vsel %vm366, %v365, 0
        %371 = vmatprep.subr.mxu0 0.0
        %372 = vmatpush1.xpose.msra.mxu0 0.0
        %373 = vmatprep.subr.mxu0 0.0
        %374 = vmatpush1.xpose.msra.mxu0 0.0
        %375 = vmatprep.subr.mxu0 0.0
        %376 = vmatpush1.xpose.msra.mxu0 0.0
        %377 = vmatprep.subr.mxu0 0.0
        %378 = vmatpush1.xpose.msra.mxu0 0.0
        %379 = vmatprep.subr.mxu0 0.0
        %380 = vmatpush1.xpose.msra.mxu0 0.0
        %381 = vmatprep.subr.mxu0 0.0
        %382 = vmatpush1.xpose.msra.mxu0 0.0
        %383 = vmatprep.subr.mxu0 0.0
        %384 = vmatpush1.xpose.msra.mxu0 0.0
        %385 = vmatprep.subr.mxu0 0.0
        %386 = vmatpush1.xpose.msra.mxu0 0.0
        %387 = vmatprep.subr.mxu0 0.0
        %388 = vmatpush1.xpose.msra.mxu0 0.0
        %389 = vmatprep.subr.mxu0 0.0
        %390 = vmatpush1.xpose.msra.mxu0 0.0
        %391 = vmatprep.subr.mxu0 0.0
        %392 = vmatpush1.xpose.msra.mxu0 0.0
        %393 = vmatprep.subr.mxu0 0.0
        %394 = vmatpush1.xpose.msra.mxu0 0.0
        %395 = vmatprep.subr.mxu0 0.0
        %396 = vmatpush1.xpose.msra.mxu0 0.0
        %397 = vmatprep.subr.mxu0 0.0
        %398 = vmatpush1.xpose.msra.mxu0 0.0
        %399 = vmatprep.subr.mxu0 0.0
        %400 = vmatpush1.xpose.msra.mxu0 0.0
        %401 = vmatprep.subr.mxu0 0.0
        %402 = vmatpush1.xpose.msra.mxu0 %v369
        %403 = vmatprep.subr.mxu0 0.0
        %404 = vmatpush2.xpose.msra.mxu0 0.0
        %405 = vmatprep.subr.mxu0 0.0
        %406 = vmatpush2.xpose.msra.mxu0 0.0
        %407 = vmatprep.subr.mxu0 0.0
        %408 = vmatpush2.xpose.msra.mxu0 0.0
        %409 = vmatprep.subr.mxu0 0.0
        %410 = vmatpush2.xpose.msra.mxu0 0.0
        %411 = vmatprep.subr.mxu0 0.0
        %412 = vmatpush2.xpose.msra.mxu0 0.0
        %413 = vmatprep.subr.mxu0 0.0
        %414 = vmatpush2.xpose.msra.mxu0 0.0
        %415 = vmatprep.subr.mxu0 0.0
        %416 = vmatpush2.xpose.msra.mxu0 0.0
        %417 = vmatprep.subr.mxu0 0.0
        %418 = vmatpush2.xpose.msra.mxu0 0.0
        %419 = vmatprep.subr.mxu0 0.0
        %420 = vmatpush2.xpose.msra.mxu0 0.0
        %421 = vmatprep.subr.mxu0 0.0
        %422 = vmatpush2.xpose.msra.mxu0 0.0
        %423 = vmatprep.subr.mxu0 0.0
        %424 = vmatpush2.xpose.msra.mxu0 0.0
        %425 = vmatprep.subr.mxu0 0.0
        %426 = vmatpush2.xpose.msra.mxu0 0.0
        %427 = vmatprep.subr.mxu0 0.0
        %428 = vmatpush2.xpose.msra.mxu0 0.0
        %429 = vmatprep.subr.mxu0 0.0
        %430 = vmatpush2.xpose.msra.mxu0 0.0
        %431 = vmatprep.subr.mxu0 0.0
        %432 = vmatpush2.xpose.msra.mxu0 0.0
        %433 = vmatprep.subr.mxu0 0.0
        %434 = vmatpush2.xpose.msra.mxu0 0.0
        %435 = vmatprep.mubr.f32.mxu0 0.0
        %436 = vmatmul.mubr.f32.gmra.mxu0 %v367
        %v437 = vpop.f32.mrf.mxu0
        %v438 = vadd.f32 0.0, %v437
        %v439 = vpop.f32.mrf.mxu0
        %440 = vdwg.mxu0
        %v441 = vsel %vm366, %v438, -inf
        %442 = vmax.xlane.f32.xlu0 %v441
        %v443 = vpop.xlane.xlu0 %442
        %v444 = vsub.f32 %v438, %v443
        %v445 = vmul.f32 %v444, 1.442695
        %v446 = vpow.pop %v445
        %v447 = vsel %vm366, %v446, 0.0
        %448 = vadd.xlane.f32.xlu0 %v447
        %v449 = vpop.xlane.xlu0 %448
        %450 = vrot.lane.b32.xlu0 %v362, 64
        %v451 = vpop.permute.xlu0 %450
        %v454 = vsel %vm366, %v446, 0
        %456 = vmatprep.subr.mxu0 0.0
        %457 = vmatpush1.msra.mxu0 0.0
        %458 = vmatprep.subr.mxu0 0.0
        %459 = vmatpush1.msra.mxu0 0.0
        %460 = vmatprep.subr.mxu0 0.0
        %461 = vmatpush1.msra.mxu0 0.0
        %462 = vmatprep.subr.mxu0 0.0
        %463 = vmatpush1.msra.mxu0 0.0
        %464 = vmatprep.subr.mxu0 0.0
        %465 = vmatpush1.msra.mxu0 0.0
        %466 = vmatprep.subr.mxu0 0.0
        %467 = vmatpush1.msra.mxu0 0.0
        %468 = vmatprep.subr.mxu0 0.0
        %469 = vmatpush1.msra.mxu0 0.0
        %470 = vmatprep.subr.mxu0 0.0
        %471 = vmatpush1.msra.mxu0 0.0
        %472 = vmatprep.subr.mxu0 0.0
        %473 = vmatpush1.msra.mxu0 0.0
        %474 = vmatprep.subr.mxu0 0.0
        %475 = vmatpush1.msra.mxu0 0.0
        %476 = vmatprep.subr.mxu0 0.0
        %477 = vmatpush1.msra.mxu0 0.0
        %478 = vmatprep.subr.mxu0 0.0
        %479 = vmatpush1.msra.mxu0 0.0
        %480 = vmatprep.subr.mxu0 0.0
        %481 = vmatpush1.msra.mxu0 0.0
        %482 = vmatprep.subr.mxu0 0.0
        %483 = vmatpush1.msra.mxu0 0.0
        %484 = vmatprep.subr.mxu0 0.0
        %485 = vmatpush1.msra.mxu0 0.0
        %486 = vmatprep.subr.mxu0 0.0
        %487 = vmatpush1.msra.mxu0 %v451
        %488 = vmatprep.subr.mxu0 0.0
        %489 = vmatpush2.msra.mxu0 0.0
        %490 = vmatprep.subr.mxu0 0.0
        %491 = vmatpush2.msra.mxu0 0.0
        %492 = vmatprep.subr.mxu0 0.0
        %493 = vmatpush2.msra.mxu0 0.0
        %494 = vmatprep.subr.mxu0 0.0
        %495 = vmatpush2.msra.mxu0 0.0
        %496 = vmatprep.subr.mxu0 0.0
        %497 = vmatpush2.msra.mxu0 0.0
        %498 = vmatprep.subr.mxu0 0.0
        %499 = vmatpush2.msra.mxu0 0.0
        %500 = vmatprep.subr.mxu0 0.0
        %501 = vmatpush2.msra.mxu0 0.0
        %502 = vmatprep.subr.mxu0 0.0
        %503 = vmatpush2.msra.mxu0 0.0
        %504 = vmatprep.subr.mxu0 0.0
        %505 = vmatpush2.msra.mxu0 0.0
        %506 = vmatprep.subr.mxu0 0.0
        %507 = vmatpush2.msra.mxu0 0.0
        %508 = vmatprep.subr.mxu0 0.0
        %509 = vmatpush2.msra.mxu0 0.0
        %510 = vmatprep.subr.mxu0 0.0
        %511 = vmatpush2.msra.mxu0 0.0
        %512 = vmatprep.subr.mxu0 0.0
        %513 = vmatpush2.msra.mxu0 0.0
        %514 = vmatprep.subr.mxu0 0.0
        %515 = vmatpush2.msra.mxu0 0.0
        %516 = vmatprep.subr.mxu0 0.0
        %517 = vmatpush2.msra.mxu0 0.0
        %518 = vmatprep.subr.mxu0 0.0
        %519 = vmatpush2.msra.mxu0 0.0
        %520 = vmatprep.mubr.f32.mxu0 0.0
        %521 = vmatmul.mubr.f32.gmra.mxu0 %v454
        %v522 = vpop.f32.mrf.mxu0
        %v523 = vadd.f32 0.0, %v522
        %v524 = vpop.f32.mrf.mxu0
        %525 = vdwg.mxu0
        %v526 = vrcp.pop %v449
        %v527 = vmul.f32 %v523, %v526
        %528 = vst.msk [vmem:[#allocation3] sm:$0xff] %vm366, %v527
        %v529 = vld [vmem:[#allocation2] sm:$0xff]
        %531 = vrot.lane.b32.xlu0 %v529, 120
        %v532 = vpop.permute.xlu0 %531
        %533 = vrot.lane.b32.xlu0 %v529, 88
        %v534 = vpop.permute.xlu0 %533
        %v535 = vsel %vm366, %v532, 0
        %v537 = vsel %vm366, %v534, 0
        %539 = vmatprep.subr.mxu0 0.0
        %540 = vmatpush1.xpose.msra.mxu0 0.0
        %541 = vmatprep.subr.mxu0 0.0
        %542 = vmatpush1.xpose.msra.mxu0 0.0
        %543 = vmatprep.subr.mxu0 0.0
        %544 = vmatpush1.xpose.msra.mxu0 0.0
        %545 = vmatprep.subr.mxu0 0.0
        %546 = vmatpush1.xpose.msra.mxu0 0.0
        %547 = vmatprep.subr.mxu0 0.0
        %548 = vmatpush1.xpose.msra.mxu0 0.0
        %549 = vmatprep.subr.mxu0 0.0
        %550 = vmatpush1.xpose.msra.mxu0 0.0
        %551 = vmatprep.subr.mxu0 0.0
        %552 = vmatpush1.xpose.msra.mxu0 0.0
        %553 = vmatprep.subr.mxu0 0.0
        %554 = vmatpush1.xpose.msra.mxu0 0.0
        %555 = vmatprep.subr.mxu0 0.0
        %556 = vmatpush1.xpose.msra.mxu0 0.0
        %557 = vmatprep.subr.mxu0 0.0
        %558 = vmatpush1.xpose.msra.mxu0 0.0
        %559 = vmatprep.subr.mxu0 0.0
        %560 = vmatpush1.xpose.msra.mxu0 0.0
        %561 = vmatprep.subr.mxu0 0.0
        %562 = vmatpush1.xpose.msra.mxu0 0.0
        %563 = vmatprep.subr.mxu0 0.0
        %564 = vmatpush1.xpose.msra.mxu0 0.0
        %565 = vmatprep.subr.mxu0 0.0
        %566 = vmatpush1.xpose.msra.mxu0 0.0
        %567 = vmatprep.subr.mxu0 0.0
        %568 = vmatpush1.xpose.msra.mxu0 0.0
        %569 = vmatprep.subr.mxu0 0.0
        %570 = vmatpush1.xpose.msra.mxu0 %v537
        %571 = vmatprep.subr.mxu0 0.0
        %572 = vmatpush2.xpose.msra.mxu0 0.0
        %573 = vmatprep.subr.mxu0 0.0
        %574 = vmatpush2.xpose.msra.mxu0 0.0
        %575 = vmatprep.subr.mxu0 0.0
        %576 = vmatpush2.xpose.msra.mxu0 0.0
        %577 = vmatprep.subr.mxu0 0.0
        %578 = vmatpush2.xpose.msra.mxu0 0.0
        %579 = vmatprep.subr.mxu0 0.0
        %580 = vmatpush2.xpose.msra.mxu0 0.0
        %581 = vmatprep.subr.mxu0 0.0
        %582 = vmatpush2.xpose.msra.mxu0 0.0
        %583 = vmatprep.subr.mxu0 0.0
        %584 = vmatpush2.xpose.msra.mxu0 0.0
        %585 = vmatprep.subr.mxu0 0.0
        %586 = vmatpush2.xpose.msra.mxu0 0.0
        %587 = vmatprep.subr.mxu0 0.0
        %588 = vmatpush2.xpose.msra.mxu0 0.0
        %589 = vmatprep.subr.mxu0 0.0
        %590 = vmatpush2.xpose.msra.mxu0 0.0
        %591 = vmatprep.subr.mxu0 0.0
        %592 = vmatpush2.xpose.msra.mxu0 0.0
        %593 = vmatprep.subr.mxu0 0.0
        %594 = vmatpush2.xpose.msra.mxu0 0.0
        %595 = vmatprep.subr.mxu0 0.0
        %596 = vmatpush2.xpose.msra.mxu0 0.0
        %597 = vmatprep.subr.mxu0 0.0
        %598 = vmatpush2.xpose.msra.mxu0 0.0
        %599 = vmatprep.subr.mxu0 0.0
        %600 = vmatpush2.xpose.msra.mxu0 0.0
        %601 = vmatprep.subr.mxu0 0.0
        %602 = vmatpush2.xpose.msra.mxu0 0.0
        %603 = vmatprep.mubr.f32.mxu0 0.0
        %604 = vmatmul.mubr.f32.gmra.mxu0 %v535
        %v605 = vpop.f32.mrf.mxu0
        %v606 = vadd.f32 0.0, %v605
        %v607 = vpop.f32.mrf.mxu0
        %608 = vdwg.mxu0
        %v609 = vsel %vm366, %v606, -inf
        %610 = vmax.xlane.f32.xlu0 %v609
        %v611 = vpop.xlane.xlu0 %610
        %v612 = vsub.f32 %v606, %v611
        %v613 = vmul.f32 %v612, 1.442695
        %v614 = vpow.pop %v613
        %v615 = vsel %vm366, %v614, 0.0
        %616 = vadd.xlane.f32.xlu0 %v615
        %v617 = vpop.xlane.xlu0 %616
        %618 = vrot.lane.b32.xlu0 %v529, 56
        %v619 = vpop.permute.xlu0 %618
        %v622 = vsel %vm366, %v614, 0
        %624 = vmatprep.subr.mxu0 0.0
        %625 = vmatpush1.msra.mxu0 0.0
        %626 = vmatprep.subr.mxu0 0.0
        %627 = vmatpush1.msra.mxu0 0.0
        %628 = vmatprep.subr.mxu0 0.0
        %629 = vmatpush1.msra.mxu0 0.0
        %630 = vmatprep.subr.mxu0 0.0
        %631 = vmatpush1.msra.mxu0 0.0
        %632 = vmatprep.subr.mxu0 0.0
        %633 = vmatpush1.msra.mxu0 0.0
        %634 = vmatprep.subr.mxu0 0.0
        %635 = vmatpush1.msra.mxu0 0.0
        %636 = vmatprep.subr.mxu0 0.0
        %637 = vmatpush1.msra.mxu0 0.0
        %638 = vmatprep.subr.mxu0 0.0
        %639 = vmatpush1.msra.mxu0 0.0
        %640 = vmatprep.subr.mxu0 0.0
        %641 = vmatpush1.msra.mxu0 0.0
        %642 = vmatprep.subr.mxu0 0.0
        %643 = vmatpush1.msra.mxu0 0.0
        %644 = vmatprep.subr.mxu0 0.0
        %645 = vmatpush1.msra.mxu0 0.0
        %646 = vmatprep.subr.mxu0 0.0
        %647 = vmatpush1.msra.mxu0 0.0
        %648 = vmatprep.subr.mxu0 0.0
        %649 = vmatpush1.msra.mxu0 0.0
        %650 = vmatprep.subr.mxu0 0.0
        %651 = vmatpush1.msra.mxu0 0.0
        %652 = vmatprep.subr.mxu0 0.0
        %653 = vmatpush1.msra.mxu0 0.0
        %654 = vmatprep.subr.mxu0 0.0
        %655 = vmatpush1.msra.mxu0 %v619
        %656 = vmatprep.subr.mxu0 0.0
        %657 = vmatpush2.msra.mxu0 0.0
        %658 = vmatprep.subr.mxu0 0.0
        %659 = vmatpush2.msra.mxu0 0.0
        %660 = vmatprep.subr.mxu0 0.0
        %661 = vmatpush2.msra.mxu0 0.0
        %662 = vmatprep.subr.mxu0 0.0
        %663 = vmatpush2.msra.mxu0 0.0
        %664 = vmatprep.subr.mxu0 0.0
        %665 = vmatpush2.msra.mxu0 0.0
        %666 = vmatprep.subr.mxu0 0.0
        %667 = vmatpush2.msra.mxu0 0.0
        %668 = vmatprep.subr.mxu0 0.0
        %669 = vmatpush2.msra.mxu0 0.0
        %670 = vmatprep.subr.mxu0 0.0
        %671 = vmatpush2.msra.mxu0 0.0
        %672 = vmatprep.subr.mxu0 0.0
        %673 = vmatpush2.msra.mxu0 0.0
        %674 = vmatprep.subr.mxu0 0.0
        %675 = vmatpush2.msra.mxu0 0.0
        %676 = vmatprep.subr.mxu0 0.0
        %677 = vmatpush2.msra.mxu0 0.0
        %678 = vmatprep.subr.mxu0 0.0
        %679 = vmatpush2.msra.mxu0 0.0
        %680 = vmatprep.subr.mxu0 0.0
        %681 = vmatpush2.msra.mxu0 0.0
        %682 = vmatprep.subr.mxu0 0.0
        %683 = vmatpush2.msra.mxu0 0.0
        %684 = vmatprep.subr.mxu0 0.0
        %685 = vmatpush2.msra.mxu0 0.0
        %686 = vmatprep.subr.mxu0 0.0
        %687 = vmatpush2.msra.mxu0 0.0
        %688 = vmatprep.mubr.f32.mxu0 0.0
        %689 = vmatmul.mubr.f32.gmra.mxu0 %v622
        %v690 = vpop.f32.mrf.mxu0
        %v691 = vadd.f32 0.0, %v690
        %v692 = vpop.f32.mrf.mxu0
        %693 = vdwg.mxu0
        %v694 = vrcp.pop %v617
        %v695 = vmul.f32 %v691, %v694
        %697 = vrot.lane.b32.xlu0 %v695, 8
        %v698 = vpop.permute.xlu0 %697
        %vm700 = vcmask 130112
        %701 = vst.msk [vmem:[#allocation3] sm:$0xff] %vm700, %v698
        %v702 = vld [vmem:[#allocation2] sm:$0xff]
        %704 = vrot.lane.b32.xlu0 %v702, 112
        %v705 = vpop.permute.xlu0 %704
        %706 = vrot.lane.b32.xlu0 %v702, 80
        %v707 = vpop.permute.xlu0 %706
        %v708 = vsel %vm366, %v705, 0
        %v710 = vsel %vm366, %v707, 0
        %712 = vmatprep.subr.mxu0 0.0
        %713 = vmatpush1.xpose.msra.mxu0 0.0
        %714 = vmatprep.subr.mxu0 0.0
        %715 = vmatpush1.xpose.msra.mxu0 0.0
        %716 = vmatprep.subr.mxu0 0.0
        %717 = vmatpush1.xpose.msra.mxu0 0.0
        %718 = vmatprep.subr.mxu0 0.0
        %719 = vmatpush1.xpose.msra.mxu0 0.0
        %720 = vmatprep.subr.mxu0 0.0
        %721 = vmatpush1.xpose.msra.mxu0 0.0
        %722 = vmatprep.subr.mxu0 0.0
        %723 = vmatpush1.xpose.msra.mxu0 0.0
        %724 = vmatprep.subr.mxu0 0.0
        %725 = vmatpush1.xpose.msra.mxu0 0.0
        %726 = vmatprep.subr.mxu0 0.0
        %727 = vmatpush1.xpose.msra.mxu0 0.0
        %728 = vmatprep.subr.mxu0 0.0
        %729 = vmatpush1.xpose.msra.mxu0 0.0
        %730 = vmatprep.subr.mxu0 0.0
        %731 = vmatpush1.xpose.msra.mxu0 0.0
        %732 = vmatprep.subr.mxu0 0.0
        %733 = vmatpush1.xpose.msra.mxu0 0.0
        %734 = vmatprep.subr.mxu0 0.0
        %735 = vmatpush1.xpose.msra.mxu0 0.0
        %736 = vmatprep.subr.mxu0 0.0
        %737 = vmatpush1.xpose.msra.mxu0 0.0
        %738 = vmatprep.subr.mxu0 0.0
        %739 = vmatpush1.xpose.msra.mxu0 0.0
        %740 = vmatprep.subr.mxu0 0.0
        %741 = vmatpush1.xpose.msra.mxu0 0.0
        %742 = vmatprep.subr.mxu0 0.0
        %743 = vmatpush1.xpose.msra.mxu0 %v710
        %744 = vmatprep.subr.mxu0 0.0
        %745 = vmatpush2.xpose.msra.mxu0 0.0
        %746 = vmatprep.subr.mxu0 0.0
        %747 = vmatpush2.xpose.msra.mxu0 0.0
        %748 = vmatprep.subr.mxu0 0.0
        %749 = vmatpush2.xpose.msra.mxu0 0.0
        %750 = vmatprep.subr.mxu0 0.0
        %751 = vmatpush2.xpose.msra.mxu0 0.0
        %752 = vmatprep.subr.mxu0 0.0
        %753 = vmatpush2.xpose.msra.mxu0 0.0
        %754 = vmatprep.subr.mxu0 0.0
        %755 = vmatpush2.xpose.msra.mxu0 0.0
        %756 = vmatprep.subr.mxu0 0.0
        %757 = vmatpush2.xpose.msra.mxu0 0.0
        %758 = vmatprep.subr.mxu0 0.0
        %759 = vmatpush2.xpose.msra.mxu0 0.0
        %760 = vmatprep.subr.mxu0 0.0
        %761 = vmatpush2.xpose.msra.mxu0 0.0
        %762 = vmatprep.subr.mxu0 0.0
        %763 = vmatpush2.xpose.msra.mxu0 0.0
        %764 = vmatprep.subr.mxu0 0.0
        %765 = vmatpush2.xpose.msra.mxu0 0.0
        %766 = vmatprep.subr.mxu0 0.0
        %767 = vmatpush2.xpose.msra.mxu0 0.0
        %768 = vmatprep.subr.mxu0 0.0
        %769 = vmatpush2.xpose.msra.mxu0 0.0
        %770 = vmatprep.subr.mxu0 0.0
        %771 = vmatpush2.xpose.msra.mxu0 0.0
        %772 = vmatprep.subr.mxu0 0.0
        %773 = vmatpush2.xpose.msra.mxu0 0.0
        %774 = vmatprep.subr.mxu0 0.0
        %775 = vmatpush2.xpose.msra.mxu0 0.0
        %776 = vmatprep.mubr.f32.mxu0 0.0
        %777 = vmatmul.mubr.f32.gmra.mxu0 %v708
        %v778 = vpop.f32.mrf.mxu0
        %v779 = vadd.f32 0.0, %v778
        %v780 = vpop.f32.mrf.mxu0
        %781 = vdwg.mxu0
        %v782 = vsel %vm366, %v779, -inf
        %783 = vmax.xlane.f32.xlu0 %v782
        %v784 = vpop.xlane.xlu0 %783
        %v785 = vsub.f32 %v779, %v784
        %v786 = vmul.f32 %v785, 1.442695
        %v787 = vpow.pop %v786
        %v788 = vsel %vm366, %v787, 0.0
        %789 = vadd.xlane.f32.xlu0 %v788
        %v790 = vpop.xlane.xlu0 %789
        %791 = vrot.lane.b32.xlu0 %v702, 48
        %v792 = vpop.permute.xlu0 %791
        %v795 = vsel %vm366, %v787, 0
        %797 = vmatprep.subr.mxu0 0.0
        %798 = vmatpush1.msra.mxu0 0.0
        %799 = vmatprep.subr.mxu0 0.0
        %800 = vmatpush1.msra.mxu0 0.0
        %801 = vmatprep.subr.mxu0 0.0
        %802 = vmatpush1.msra.mxu0 0.0
        %803 = vmatprep.subr.mxu0 0.0
        %804 = vmatpush1.msra.mxu0 0.0
        %805 = vmatprep.subr.mxu0 0.0
        %806 = vmatpush1.msra.mxu0 0.0
        %807 = vmatprep.subr.mxu0 0.0
        %808 = vmatpush1.msra.mxu0 0.0
        %809 = vmatprep.subr.mxu0 0.0
        %810 = vmatpush1.msra.mxu0 0.0
        %811 = vmatprep.subr.mxu0 0.0
        %812 = vmatpush1.msra.mxu0 0.0
        %813 = vmatprep.subr.mxu0 0.0
        %814 = vmatpush1.msra.mxu0 0.0
        %815 = vmatprep.subr.mxu0 0.0
        %816 = vmatpush1.msra.mxu0 0.0
        %817 = vmatprep.subr.mxu0 0.0
        %818 = vmatpush1.msra.mxu0 0.0
        %819 = vmatprep.subr.mxu0 0.0
        %820 = vmatpush1.msra.mxu0 0.0
        %821 = vmatprep.subr.mxu0 0.0
        %822 = vmatpush1.msra.mxu0 0.0
        %823 = vmatprep.subr.mxu0 0.0
        %824 = vmatpush1.msra.mxu0 0.0
        %825 = vmatprep.subr.mxu0 0.0
        %826 = vmatpush1.msra.mxu0 0.0
        %827 = vmatprep.subr.mxu0 0.0
        %828 = vmatpush1.msra.mxu0 %v792
        %829 = vmatprep.subr.mxu0 0.0
        %830 = vmatpush2.msra.mxu0 0.0
        %831 = vmatprep.subr.mxu0 0.0
        %832 = vmatpush2.msra.mxu0 0.0
        %833 = vmatprep.subr.mxu0 0.0
        %834 = vmatpush2.msra.mxu0 0.0
        %835 = vmatprep.subr.mxu0 0.0
        %836 = vmatpush2.msra.mxu0 0.0
        %837 = vmatprep.subr.mxu0 0.0
        %838 = vmatpush2.msra.mxu0 0.0
        %839 = vmatprep.subr.mxu0 0.0
        %840 = vmatpush2.msra.mxu0 0.0
        %841 = vmatprep.subr.mxu0 0.0
        %842 = vmatpush2.msra.mxu0 0.0
        %843 = vmatprep.subr.mxu0 0.0
        %844 = vmatpush2.msra.mxu0 0.0
        %845 = vmatprep.subr.mxu0 0.0
        %846 = vmatpush2.msra.mxu0 0.0
        %847 = vmatprep.subr.mxu0 0.0
        %848 = vmatpush2.msra.mxu0 0.0
        %849 = vmatprep.subr.mxu0 0.0
        %850 = vmatpush2.msra.mxu0 0.0
        %851 = vmatprep.subr.mxu0 0.0
        %852 = vmatpush2.msra.mxu0 0.0
        %853 = vmatprep.subr.mxu0 0.0
        %854 = vmatpush2.msra.mxu0 0.0
        %855 = vmatprep.subr.mxu0 0.0
        %856 = vmatpush2.msra.mxu0 0.0
        %857 = vmatprep.subr.mxu0 0.0
        %858 = vmatpush2.msra.mxu0 0.0
        %859 = vmatprep.subr.mxu0 0.0
        %860 = vmatpush2.msra.mxu0 0.0
        %861 = vmatprep.mubr.f32.mxu0 0.0
        %862 = vmatmul.mubr.f32.gmra.mxu0 %v795
        %v863 = vpop.f32.mrf.mxu0
        %v864 = vadd.f32 0.0, %v863
        %v865 = vpop.f32.mrf.mxu0
        %866 = vdwg.mxu0
        %v867 = vrcp.pop %v790
        %v868 = vmul.f32 %v864, %v867
        %870 = vrot.lane.b32.xlu0 %v868, 16
        %v871 = vpop.permute.xlu0 %870
        %vm873 = vcmask 195712
        %874 = vst.msk [vmem:[#allocation3] sm:$0xff] %vm873, %v871
        %v875 = vld [vmem:[#allocation2] sm:$0xff]
        %877 = vrot.lane.b32.xlu0 %v875, 104
        %v878 = vpop.permute.xlu0 %877
        %879 = vrot.lane.b32.xlu0 %v875, 72
        %v880 = vpop.permute.xlu0 %879
        %v881 = vsel %vm366, %v878, 0
        %v883 = vsel %vm366, %v880, 0
        %885 = vmatprep.subr.mxu0 0.0
        %886 = vmatpush1.xpose.msra.mxu0 0.0
        %887 = vmatprep.subr.mxu0 0.0
        %888 = vmatpush1.xpose.msra.mxu0 0.0
        %889 = vmatprep.subr.mxu0 0.0
        %890 = vmatpush1.xpose.msra.mxu0 0.0
        %891 = vmatprep.subr.mxu0 0.0
        %892 = vmatpush1.xpose.msra.mxu0 0.0
        %893 = vmatprep.subr.mxu0 0.0
        %894 = vmatpush1.xpose.msra.mxu0 0.0
        %895 = vmatprep.subr.mxu0 0.0
        %896 = vmatpush1.xpose.msra.mxu0 0.0
        %897 = vmatprep.subr.mxu0 0.0
        %898 = vmatpush1.xpose.msra.mxu0 0.0
        %899 = vmatprep.subr.mxu0 0.0
        %900 = vmatpush1.xpose.msra.mxu0 0.0
        %901 = vmatprep.subr.mxu0 0.0
        %902 = vmatpush1.xpose.msra.mxu0 0.0
        %903 = vmatprep.subr.mxu0 0.0
        %904 = vmatpush1.xpose.msra.mxu0 0.0
        %905 = vmatprep.subr.mxu0 0.0
        %906 = vmatpush1.xpose.msra.mxu0 0.0
        %907 = vmatprep.subr.mxu0 0.0
        %908 = vmatpush1.xpose.msra.mxu0 0.0
        %909 = vmatprep.subr.mxu0 0.0
        %910 = vmatpush1.xpose.msra.mxu0 0.0
        %911 = vmatprep.subr.mxu0 0.0
        %912 = vmatpush1.xpose.msra.mxu0 0.0
        %913 = vmatprep.subr.mxu0 0.0
        %914 = vmatpush1.xpose.msra.mxu0 0.0
        %915 = vmatprep.subr.mxu0 0.0
        %916 = vmatpush1.xpose.msra.mxu0 %v883
        %917 = vmatprep.subr.mxu0 0.0
        %918 = vmatpush2.xpose.msra.mxu0 0.0
        %919 = vmatprep.subr.mxu0 0.0
        %920 = vmatpush2.xpose.msra.mxu0 0.0
        %921 = vmatprep.subr.mxu0 0.0
        %922 = vmatpush2.xpose.msra.mxu0 0.0
        %923 = vmatprep.subr.mxu0 0.0
        %924 = vmatpush2.xpose.msra.mxu0 0.0
        %925 = vmatprep.subr.mxu0 0.0
        %926 = vmatpush2.xpose.msra.mxu0 0.0
        %927 = vmatprep.subr.mxu0 0.0
        %928 = vmatpush2.xpose.msra.mxu0 0.0
        %929 = vmatprep.subr.mxu0 0.0
        %930 = vmatpush2.xpose.msra.mxu0 0.0
        %931 = vmatprep.subr.mxu0 0.0
        %932 = vmatpush2.xpose.msra.mxu0 0.0
        %933 = vmatprep.subr.mxu0 0.0
        %934 = vmatpush2.xpose.msra.mxu0 0.0
        %935 = vmatprep.subr.mxu0 0.0
        %936 = vmatpush2.xpose.msra.mxu0 0.0
        %937 = vmatprep.subr.mxu0 0.0
        %938 = vmatpush2.xpose.msra.mxu0 0.0
        %939 = vmatprep.subr.mxu0 0.0
        %940 = vmatpush2.xpose.msra.mxu0 0.0
        %941 = vmatprep.subr.mxu0 0.0
        %942 = vmatpush2.xpose.msra.mxu0 0.0
        %943 = vmatprep.subr.mxu0 0.0
        %944 = vmatpush2.xpose.msra.mxu0 0.0
        %945 = vmatprep.subr.mxu0 0.0
        %946 = vmatpush2.xpose.msra.mxu0 0.0
        %947 = vmatprep.subr.mxu0 0.0
        %948 = vmatpush2.xpose.msra.mxu0 0.0
        %949 = vmatprep.mubr.f32.mxu0 0.0
        %950 = vmatmul.mubr.f32.gmra.mxu0 %v881
        %v951 = vpop.f32.mrf.mxu0
        %v952 = vadd.f32 0.0, %v951
        %v953 = vpop.f32.mrf.mxu0
        %954 = vdwg.mxu0
        %v955 = vsel %vm366, %v952, -inf
        %956 = vmax.xlane.f32.xlu0 %v955
        %v957 = vpop.xlane.xlu0 %956
        %v958 = vsub.f32 %v952, %v957
        %v959 = vmul.f32 %v958, 1.442695
        %v960 = vpow.pop %v959
        %v961 = vsel %vm366, %v960, 0.0
        %962 = vadd.xlane.f32.xlu0 %v961
        %v963 = vpop.xlane.xlu0 %962
        %964 = vrot.lane.b32.xlu0 %v875, 40
        %v965 = vpop.permute.xlu0 %964
        %v968 = vsel %vm366, %v960, 0
        %970 = vmatprep.subr.mxu0 0.0
        %971 = vmatpush1.msra.mxu0 0.0
        %972 = vmatprep.subr.mxu0 0.0
        %973 = vmatpush1.msra.mxu0 0.0
        %974 = vmatprep.subr.mxu0 0.0
        %975 = vmatpush1.msra.mxu0 0.0
        %976 = vmatprep.subr.mxu0 0.0
        %977 = vmatpush1.msra.mxu0 0.0
        %978 = vmatprep.subr.mxu0 0.0
        %979 = vmatpush1.msra.mxu0 0.0
        %980 = vmatprep.subr.mxu0 0.0
        %981 = vmatpush1.msra.mxu0 0.0
        %982 = vmatprep.subr.mxu0 0.0
        %983 = vmatpush1.msra.mxu0 0.0
        %984 = vmatprep.subr.mxu0 0.0
        %985 = vmatpush1.msra.mxu0 0.0
        %986 = vmatprep.subr.mxu0 0.0
        %987 = vmatpush1.msra.mxu0 0.0
        %988 = vmatprep.subr.mxu0 0.0
        %989 = vmatpush1.msra.mxu0 0.0
        %990 = vmatprep.subr.mxu0 0.0
        %991 = vmatpush1.msra.mxu0 0.0
        %992 = vmatprep.subr.mxu0 0.0
        %993 = vmatpush1.msra.mxu0 0.0
        %994 = vmatprep.subr.mxu0 0.0
        %995 = vmatpush1.msra.mxu0 0.0
        %996 = vmatprep.subr.mxu0 0.0
        %997 = vmatpush1.msra.mxu0 0.0
        %998 = vmatprep.subr.mxu0 0.0
        %999 = vmatpush1.msra.mxu0 0.0
        %1000 = vmatprep.subr.mxu0 0.0
        %1001 = vmatpush1.msra.mxu0 %v965
        %1002 = vmatprep.subr.mxu0 0.0
        %1003 = vmatpush2.msra.mxu0 0.0
        %1004 = vmatprep.subr.mxu0 0.0
        %1005 = vmatpush2.msra.mxu0 0.0
        %1006 = vmatprep.subr.mxu0 0.0
        %1007 = vmatpush2.msra.mxu0 0.0
        %1008 = vmatprep.subr.mxu0 0.0
        %1009 = vmatpush2.msra.mxu0 0.0
        %1010 = vmatprep.subr.mxu0 0.0
        %1011 = vmatpush2.msra.mxu0 0.0
        %1012 = vmatprep.subr.mxu0 0.0
        %1013 = vmatpush2.msra.mxu0 0.0
        %1014 = vmatprep.subr.mxu0 0.0
        %1015 = vmatpush2.msra.mxu0 0.0
        %1016 = vmatprep.subr.mxu0 0.0
        %1017 = vmatpush2.msra.mxu0 0.0
        %1018 = vmatprep.subr.mxu0 0.0
        %1019 = vmatpush2.msra.mxu0 0.0
        %1020 = vmatprep.subr.mxu0 0.0
        %1021 = vmatpush2.msra.mxu0 0.0
        %1022 = vmatprep.subr.mxu0 0.0
        %1023 = vmatpush2.msra.mxu0 0.0
        %1024 = vmatprep.subr.mxu0 0.0
        %1025 = vmatpush2.msra.mxu0 0.0
        %1026 = vmatprep.subr.mxu0 0.0
        %1027 = vmatpush2.msra.mxu0 0.0
        %1028 = vmatprep.subr.mxu0 0.0
        %1029 = vmatpush2.msra.mxu0 0.0
        %1030 = vmatprep.subr.mxu0 0.0
        %1031 = vmatpush2.msra.mxu0 0.0
        %1032 = vmatprep.subr.mxu0 0.0
        %1033 = vmatpush2.msra.mxu0 0.0
        %1034 = vmatprep.mubr.f32.mxu0 0.0
        %1035 = vmatmul.mubr.f32.gmra.mxu0 %v968
        %v1036 = vpop.f32.mrf.mxu0
        %v1037 = vadd.f32 0.0, %v1036
        %v1038 = vpop.f32.mrf.mxu0
        %1039 = vdwg.mxu0
        %v1040 = vrcp.pop %v963
        %v1041 = vmul.f32 %v1037, %v1040
        %1043 = vrot.lane.b32.xlu0 %v1041, 24
        %v1044 = vpop.permute.xlu0 %1043
        %vm1046 = vcmask 261312
        %1047 = vst.msk [vmem:[#allocation3] sm:$0xff] %vm1046, %v1044
        %v1048 = vld [vmem:[#allocation3] sm:$0xff]
        %v1050 = vlaneseq
        %v1051 = vshrl.u32 %v1050, 7
        %v1052 = vsub.s32 0, %v1051
        %v1053 = vrot.slane %v278, %v1052
        %v1056 = vsel %vm286, %v1048, 0
        %1058 = vmatprep.subr.mxu0 0.0
        %1059 = vmatpush1.msra.mxu0 0.0
        %1060 = vmatprep.subr.mxu0 0.0
        %1061 = vmatpush1.msra.mxu0 0.0
        %1062 = vmatprep.subr.mxu0 0.0
        %1063 = vmatpush1.msra.mxu0 0.0
        %1064 = vmatprep.subr.mxu0 0.0
        %1065 = vmatpush1.msra.mxu0 0.0
        %1066 = vmatprep.subr.mxu0 0.0
        %1067 = vmatpush1.msra.mxu0 0.0
        %1068 = vmatprep.subr.mxu0 0.0
        %1069 = vmatpush1.msra.mxu0 0.0
        %1070 = vmatprep.subr.mxu0 0.0
        %1071 = vmatpush1.msra.mxu0 0.0
        %1072 = vmatprep.subr.mxu0 0.0
        %1073 = vmatpush1.msra.mxu0 0.0
        %1074 = vmatprep.subr.mxu0 0.0
        %1075 = vmatpush1.msra.mxu0 0.0
        %1076 = vmatprep.subr.mxu0 0.0
        %1077 = vmatpush1.msra.mxu0 0.0
        %1078 = vmatprep.subr.mxu0 0.0
        %1079 = vmatpush1.msra.mxu0 0.0
        %1080 = vmatprep.subr.mxu0 0.0
        %1081 = vmatpush1.msra.mxu0 0.0
        %1082 = vmatprep.subr.mxu0 0.0
        %1083 = vmatpush1.msra.mxu0 %v277
        %1084 = vmatprep.subr.mxu0 0.0
        %1085 = vmatpush1.msra.mxu0 %v276
        %1086 = vmatprep.subr.mxu0 0.0
        %1087 = vmatpush1.msra.mxu0 %v275
        %1088 = vmatprep.subr.mxu0 0.0
        %1089 = vmatpush1.msra.mxu0 %v274
        %1090 = vmatprep.subr.mxu0 0.0
        %1091 = vmatpush2.msra.mxu0 0.0
        %1092 = vmatprep.subr.mxu0 0.0
        %1093 = vmatpush2.msra.mxu0 0.0
        %1094 = vmatprep.subr.mxu0 0.0
        %1095 = vmatpush2.msra.mxu0 0.0
        %1096 = vmatprep.subr.mxu0 0.0
        %1097 = vmatpush2.msra.mxu0 0.0
        %1098 = vmatprep.subr.mxu0 0.0
        %1099 = vmatpush2.msra.mxu0 0.0
        %1100 = vmatprep.subr.mxu0 0.0
        %1101 = vmatpush2.msra.mxu0 0.0
        %1102 = vmatprep.subr.mxu0 0.0
        %1103 = vmatpush2.msra.mxu0 0.0
        %1104 = vmatprep.subr.mxu0 0.0
        %1105 = vmatpush2.msra.mxu0 0.0
        %1106 = vmatprep.subr.mxu0 0.0
        %1107 = vmatpush2.msra.mxu0 0.0
        %1108 = vmatprep.subr.mxu0 0.0
        %1109 = vmatpush2.msra.mxu0 0.0
        %1110 = vmatprep.subr.mxu0 0.0
        %1111 = vmatpush2.msra.mxu0 0.0
        %1112 = vmatprep.subr.mxu0 0.0
        %1113 = vmatpush2.msra.mxu0 0.0
        %1114 = vmatprep.subr.mxu0 0.0
        %1115 = vmatpush2.msra.mxu0 0.0
        %1116 = vmatprep.subr.mxu0 0.0
        %1117 = vmatpush2.msra.mxu0 0.0
        %1118 = vmatprep.subr.mxu0 0.0
        %1119 = vmatpush2.msra.mxu0 0.0
        %1120 = vmatprep.subr.mxu0 0.0
        %1121 = vmatpush2.msra.mxu0 0.0
        %1122 = vmatprep.mubr.f32.mxu0 0.0
        %1123 = vmatmul.mubr.f32.gmra.mxu0 %v1056
        %v1124 = vpop.f32.mrf.mxu0
        %v1125 = vadd.f32 %v1053, %v1124
        %v1126 = vpop.f32.mrf.mxu0
        %1127 = vdwg.mxu0
        %1128 = vst.msk [vmem:[%s268] sm:$0xff] %vm286, %v1125
        %s1129 = sand.u32 %s141, 1
        %s1130 = scalar_lea.sflag [#allocation6], %s1129
        %s1131 = sand.u32 %s141, 1
        %s1132 = smul.addr %s1131, 8
        %s1133 = scalar_lea.vmem [#allocation10], %s1132
        // Predicated region
        $region53: #{tpu_custom_call.1} parent=39 // pred_check
          %p1134 = pneg %p151
        $region54: #{tpu_custom_call.1} parent=39 // pred_check_branch
          %1136 = sbr.rel (%p1134) target = $region56
        $region55: #{tpu_custom_call.1} parent=39 // pred_region
          %s1138 = ssub.s32 128, 128
          %1139 = vsyncadd %s1130, %s1138
          %s1140 = smul.addr %s23, 128
          %s1141 = scalar_lea.hbm %s5, %s1140
          %s1143 = sshll.u32 %s1133, 4
          %s1144 = int_to_ptr.vmem [resolvable:$true] %s1143
          %1146 = dma.vmem_to_hbm [thread:$0]  %s1144, 128, %s1141, %s1130
        $region56: #{tpu_custom_call.1} parent=39 // pred_fallthru
          _
      $region40: #{tpu_custom_call.1} parent=5 // pred_fallthru
        _
      %p1147 = scmp.le.s32.totalorder 2, %s18
      // Predicated region
      $region57: #{tpu_custom_call.1} parent=5 // pred_check
        %p1148 = pneg %p1147
      $region58: #{tpu_custom_call.1} parent=5 // pred_check_branch
        %1150 = sbr.rel (%p1148) target = $region60
      $region59: #{tpu_custom_call.1} parent=5 // pred_region
        %s1151 = ssub.s32 %s18, 2
        // Predicated region
        $region61: #{tpu_custom_call.1} parent=59 // pred_check
          %p1152 = pneg %p157
        $region62: #{tpu_custom_call.1} parent=59 // pred_check_branch
          %1154 = sbr.rel (%p1152) target = $region64
        $region63: #{tpu_custom_call.1} parent=59 // pred_region
          %s1155 = sand.u32 %s142, 1
          %s1156 = scalar_lea.sflag [#allocation6], %s1155
          %s1157 = sand.u32 %s142, 1
          %s1158 = smul.addr %s1157, 8
          %s1159 = scalar_lea.vmem [#allocation10], %s1158
          %1160 = dma.done %s1156, 128
        $region64: #{tpu_custom_call.1} parent=59 // pred_fallthru
          _
      $region60: #{tpu_custom_call.1} parent=5 // pred_fallthru
        _
    $region6: #{tpu_custom_call.1} parent=1 // loop_footer
      %s22 = sadd.s32 1, %s18
    $region7: #{tpu_custom_call.1} parent=1 // loop_footer_branch
      %17 = sbr.rel target = $region3
    $region8: #{tpu_custom_call.1} parent=1 // loop_exit
      _
    %1161 = vsyncpa [#allocation5], 1
    %s1162 = scalar_lea.sflag [#allocation5], 1
    %1163 = vsyncpa %s1162, 1
    %1164 = vsyncpa [#allocation8], 1
    %1165 = vsyncpa [#allocation6], 1
    %s1166 = scalar_lea.sflag [#allocation6], 1
    %1167 = vsyncpa %s1166, 1

</llo_original>
